<compile_context>
chip_gen: v7x
topology: tpu7x:2x2x1
jax: 0.10.0
libtpu: 0.0.40
codegen_flags: <defaults>
</compile_context>

<pallas_src>
import functools

import jax
import jax.numpy as jnp
from jax.experimental import pallas as pl
from jax.experimental.pallas import tpu as pltpu


def mlp_kernel(x_ref, w1_ref, b1_ref, w2_ref, b2_ref, w3_ref, b3_ref, o_ref,
               *, compute_dtype):
    # fc1 + ReLU  (MXU, f32 accumulate)
    x = x_ref[...].astype(compute_dtype)
    h1 = jnp.dot(x, w1_ref[...].astype(compute_dtype),
                 preferred_element_type=jnp.float32)
    h1 = jnp.maximum(h1 + b1_ref[...], 0.0)
    # fc2 + ReLU  (MXU, f32 accumulate)
    h2 = jnp.dot(h1.astype(compute_dtype), w2_ref[...].astype(compute_dtype),
                 preferred_element_type=jnp.float32)
    h2 = jnp.maximum(h2 + b2_ref[...], 0.0)
    # fc3: single output column -> VPU multiply + XLU row-reduce (skip the MXU).
    # w3_ref is the (1, 32) weight row, b3_ref is (1, 1).
    o_col = jnp.sum(h2 * w3_ref[...], axis=-1, keepdims=True) + b3_ref[...]
    # Narrow (tile_b, 1) store: only 4 B/row of HBM writeback.
    o_ref[...] = o_col.astype(o_ref.dtype)


def _round_up(n, m):
    return ((n + m - 1) // m) * m


def _choose_tiling(batch, tile_cap):
    """Pick (tile_b, padded_batch, num_tiles).

    Rows-per-tile is a multiple of 8 (sublane granularity).  Aim for >= 2
    balanced tiles so the 'parallel' grid axis can shard across both v7x
    TensorCores, keep padding minimal (<= 7 rows per tile), and cap the tile
    at tile_cap rows (per-step overhead ~0.35 us amortizes well at 1-2K rows;
    VMEM use stays ~1-2 MiB, far under the scoped limit on all chips).
    """
    cap = max(8, (tile_cap // 8) * 8)
    padded_min = _round_up(batch, 8)
    if padded_min <= 16:          # too small to split usefully
        return padded_min, padded_min, 1
    num_tiles = max(2, -(-padded_min // cap))            # cdiv
    tile_b = _round_up(-(-padded_min // num_tiles), 8)   # balanced tiles
    return tile_b, tile_b * num_tiles, num_tiles


def mlp_forward(x, w1, b1, w2, b2, w3_row, b3, *, tile_cap=2048,
                compute_dtype=jnp.float32):
    batch, d_in = x.shape
    d_h1 = w1.shape[1]
    d_h2 = w2.shape[1]

    tile_b, padded, num_tiles = _choose_tiling(batch, tile_cap)
    if padded != batch:
        x = jnp.pad(x, ((0, padded - batch), (0, 0)))

    weight_bytes = (d_in * d_h1 + d_h1 + d_h1 * d_h2 + d_h2 + d_h2 + 1) * 4
    cost = pl.CostEstimate(
        flops=2 * padded * (d_in * d_h1 + d_h1 * d_h2 + d_h2),
        transcendentals=0,
        # Honest traffic: x read + narrow (width-1) output write + weights.
        bytes_accessed=padded * (d_in + 1) * 4 + weight_bytes,
    )

    out_padded = pl.pallas_call(
        functools.partial(mlp_kernel, compute_dtype=compute_dtype),
        out_shape=jax.ShapeDtypeStruct((padded, 1), jnp.float32),
        grid=(num_tiles,),
        in_specs=[
            pl.BlockSpec((tile_b, d_in), lambda i: (i, 0)),   # x: streamed per tile
            pl.BlockSpec((d_in, d_h1), lambda i: (0, 0)),     # w1: VMEM-resident
            pl.BlockSpec((1, d_h1), lambda i: (0, 0)),        # b1
            pl.BlockSpec((d_h1, d_h2), lambda i: (0, 0)),     # w2
            pl.BlockSpec((1, d_h2), lambda i: (0, 0)),        # b2
            pl.BlockSpec((1, d_h2), lambda i: (0, 0)),        # w3 (row form)
            pl.BlockSpec((1, 1), lambda i: (0, 0)),           # b3
        ],
        out_specs=pl.BlockSpec((tile_b, 1), lambda i: (i, 0)),
        compiler_params=pltpu.CompilerParams(
            dimension_semantics=("parallel",),   # shard tiles across v7x TCs
        ),
        cost_estimate=cost,
    )(x, w1, b1, w2, b2, w3_row, b3)

    # Drop the padded rows; output already has the single real column.
    return out_padded[:batch]


def init_params(key, input_dim):
    # Deterministic synthetic init (PyTorch-style uniform bound 1/sqrt(fan_in)).
    # Weights stored as (in, out); fc3 weight also kept as a (1, 32) row.
    dims = [(input_dim, 64), (64, 32), (32, 1)]
    params = []
    for fan_in, fan_out in dims:
        key, kw, kb = jax.random.split(key, 3)
        bound = 1.0 / jnp.sqrt(fan_in)
        w = jax.random.uniform(kw, (fan_in, fan_out), jnp.float32, -bound, bound)
        b = jax.random.uniform(kb, (1, fan_out), jnp.float32, -bound, bound)
        params += [w, b]
    w1, b1, w2, b2, w3, b3 = params
    w3_row = w3.T          # (1, 32) row for the in-kernel VPU reduction
    return w1, b1, w2, b2, w3, b3, w3_row


def reference(x, w1, b1, w2, b2, w3, b3):
    h = jnp.maximum(x @ w1 + b1, 0.0)
    h = jnp.maximum(h @ w2 + b2, 0.0)
    return h @ w3 + b3


if __name__ == "__main__":
    key = jax.random.PRNGKey(0)
    key, kx1, kx2 = jax.random.split(key, 3)

    batch, input_dim = 8, 32
    w1, b1, w2, b2, w3, b3, w3_row = init_params(key, input_dim)

    # Small-batch check (single grid tile).
    x = jax.random.normal(kx1, (batch, input_dim), dtype=jnp.float32)
    out = mlp_forward(x, w1, b1, w2, b2, w3_row, b3)
    out = jax.block_until_ready(out)
    ref = reference(x, w1, b1, w2, b2, w3, b3)
    assert out.shape == (batch, 1)
    assert jnp.allclose(out, ref, atol=1e-4, rtol=1e-4)

    # Multi-tile check (exercises balanced tiling + small-padding tail path:
    # 300 rows -> 2 tiles of 152, padded to 304).
    big_batch = 300
    xb = jax.random.normal(kx2, (big_batch, input_dim), dtype=jnp.float32)
    out_b = mlp_forward(xb, w1, b1, w2, b2, w3_row, b3)
    out_b = jax.block_until_ready(out_b)
    ref_b = reference(xb, w1, b1, w2, b2, w3, b3)
    assert out_b.shape == (big_batch, 1)
    assert jnp.allclose(out_b, ref_b, atol=1e-4, rtol=1e-4)

    print("KERNEL_OK")
</pallas_src>

<mosaic_0001>
module attributes {stable_mosaic.version = 11 : i64} {
  func.func @mlp_kernel(%arg0: i32, %arg1: memref<8x32xf32, #tpu.memory_space<vmem>>, %arg2: memref<32x64xf32, #tpu.memory_space<vmem>>, %arg3: memref<1x64xf32, #tpu.memory_space<vmem>>, %arg4: memref<64x32xf32, #tpu.memory_space<vmem>>, %arg5: memref<1x32xf32, #tpu.memory_space<vmem>>, %arg6: memref<1x32xf32, #tpu.memory_space<vmem>>, %arg7: memref<1x1xf32, #tpu.memory_space<vmem>>, %arg8: memref<8x1xf32, #tpu.memory_space<vmem>>) attributes {dimension_semantics = [#tpu.dimension_semantics<parallel>], iteration_bounds = array<i64: 1>, scalar_prefetch = 0 : i64, scratch_operands = 0 : i64, tpu.core_type = #tpu.core_type<tc>, window_params = [{transform_indices = @transform_0, window_bounds = array<i64: 8, 32>}, {pipeline_mode = #tpu.pipeline_mode<synchronous>, transform_indices = @transform_1, window_bounds = array<i64: 32, 64>}, {pipeline_mode = #tpu.pipeline_mode<synchronous>, transform_indices = @transform_2, window_bounds = array<i64: 1, 64>}, {pipeline_mode = #tpu.pipeline_mode<synchronous>, transform_indices = @transform_3, window_bounds = array<i64: 64, 32>}, {pipeline_mode = #tpu.pipeline_mode<synchronous>, transform_indices = @transform_4, window_bounds = array<i64: 1, 32>}, {pipeline_mode = #tpu.pipeline_mode<synchronous>, transform_indices = @transform_5, window_bounds = array<i64: 1, 32>}, {pipeline_mode = #tpu.pipeline_mode<synchronous>, transform_indices = @transform_6, window_bounds = array<i64: 1, 1>}, {transform_indices = @transform_7, window_bounds = array<i64: 8, 1>}]} {
    %c0 = arith.constant 0 : index
    %c0_0 = arith.constant 0 : index
    %0 = vector.load %arg1[%c0, %c0_0] : memref<8x32xf32, #tpu.memory_space<vmem>>, vector<8x32xf32>
    %c0_1 = arith.constant 0 : index
    %c0_2 = arith.constant 0 : index
    %1 = vector.load %arg2[%c0_1, %c0_2] : memref<32x64xf32, #tpu.memory_space<vmem>>, vector<32x64xf32>
    %cst = arith.constant dense<0.000000e+00> : vector<8x64xf32>
    %2 = tpu.matmul %0, %1, %cst {dimension_numbers = #tpu.dot_dimension_numbers<[1], [0], [0], [1], [0, 0, 1, 1], [], []>} : vector<8x32xf32>, vector<32x64xf32>, vector<8x64xf32> -> vector<8x64xf32>
    %c0_3 = arith.constant 0 : index
    %c0_4 = arith.constant 0 : index
    %3 = vector.load %arg3[%c0_3, %c0_4] : memref<1x64xf32, #tpu.memory_space<vmem>>, vector<1x64xf32>
    %4 = vector.broadcast %3 : vector<1x64xf32> to vector<8x64xf32>
    %5 = arith.addf %2, %4 : vector<8x64xf32>
    %cst_5 = arith.constant 0.000000e+00 : f32
    %6 = vector.broadcast %cst_5 : f32 to vector<8x64xf32>
    %7 = arith.maximumf %5, %6 : vector<8x64xf32>
    %c0_6 = arith.constant 0 : index
    %c0_7 = arith.constant 0 : index
    %8 = vector.load %arg4[%c0_6, %c0_7] : memref<64x32xf32, #tpu.memory_space<vmem>>, vector<64x32xf32>
    %cst_8 = arith.constant dense<0.000000e+00> : vector<8x32xf32>
    %9 = tpu.matmul %7, %8, %cst_8 {dimension_numbers = #tpu.dot_dimension_numbers<[1], [0], [0], [1], [0, 0, 1, 1], [], []>} : vector<8x64xf32>, vector<64x32xf32>, vector<8x32xf32> -> vector<8x32xf32>
    %c0_9 = arith.constant 0 : index
    %c0_10 = arith.constant 0 : index
    %10 = vector.load %arg5[%c0_9, %c0_10] : memref<1x32xf32, #tpu.memory_space<vmem>>, vector<1x32xf32>
    %11 = vector.broadcast %10 : vector<1x32xf32> to vector<8x32xf32>
    %12 = arith.addf %9, %11 : vector<8x32xf32>
    %cst_11 = arith.constant 0.000000e+00 : f32
    %13 = vector.broadcast %cst_11 : f32 to vector<8x32xf32>
    %14 = arith.maximumf %12, %13 : vector<8x32xf32>
    %c0_12 = arith.constant 0 : index
    %c0_13 = arith.constant 0 : index
    %15 = vector.load %arg6[%c0_12, %c0_13] : memref<1x32xf32, #tpu.memory_space<vmem>>, vector<1x32xf32>
    %16 = vector.broadcast %15 : vector<1x32xf32> to vector<8x32xf32>
    %17 = arith.mulf %14, %16 : vector<8x32xf32>
    %cst_14 = arith.constant dense<0.000000e+00> : vector<8xf32>
    %18 = vector.multi_reduction <add>, %17, %cst_14 [1] : vector<8x32xf32> to vector<8xf32>
    %19 = vector.shape_cast %18 : vector<8xf32> to vector<8x1xf32>
    %c0_15 = arith.constant 0 : index
    %c0_16 = arith.constant 0 : index
    %20 = vector.load %arg7[%c0_15, %c0_16] : memref<1x1xf32, #tpu.memory_space<vmem>>, vector<1x1xf32>
    %21 = vector.broadcast %20 : vector<1x1xf32> to vector<8x1xf32>
    %22 = arith.addf %19, %21 : vector<8x1xf32>
    %c0_17 = arith.constant 0 : index
    %c0_18 = arith.constant 0 : index
    %23 = vector.load %arg8[%c0_17, %c0_18] : memref<8x1xf32, #tpu.memory_space<vmem>>, vector<8x1xf32>
    tpu.vector_store %arg8[%c0_17, %c0_18], %22 {strides = array<i32>} : memref<8x1xf32, #tpu.memory_space<vmem>>, vector<8x1xf32>,
    return
  }
  func.func @transform_0(%arg0: i32) -> (i32, i32) {
    %c0_i32 = arith.constant 0 : i32
    %c0_i32_0 = arith.constant 0 : i32
    return %arg0, %c0_i32 : i32, i32
  }
  func.func @transform_1(%arg0: i32) -> (i32, i32) {
    %c0_i32 = arith.constant 0 : i32
    %c0_i32_0 = arith.constant 0 : i32
    %c0_i32_1 = arith.constant 0 : i32
    return %c0_i32, %c0_i32_0 : i32, i32
  }
  func.func @transform_2(%arg0: i32) -> (i32, i32) {
    %c0_i32 = arith.constant 0 : i32
    %c0_i32_0 = arith.constant 0 : i32
    %c0_i32_1 = arith.constant 0 : i32
    return %c0_i32, %c0_i32_0 : i32, i32
  }
  func.func @transform_3(%arg0: i32) -> (i32, i32) {
    %c0_i32 = arith.constant 0 : i32
    %c0_i32_0 = arith.constant 0 : i32
    %c0_i32_1 = arith.constant 0 : i32
    return %c0_i32, %c0_i32_0 : i32, i32
  }
  func.func @transform_4(%arg0: i32) -> (i32, i32) {
    %c0_i32 = arith.constant 0 : i32
    %c0_i32_0 = arith.constant 0 : i32
    %c0_i32_1 = arith.constant 0 : i32
    return %c0_i32, %c0_i32_0 : i32, i32
  }
  func.func @transform_5(%arg0: i32) -> (i32, i32) {
    %c0_i32 = arith.constant 0 : i32
    %c0_i32_0 = arith.constant 0 : i32
    %c0_i32_1 = arith.constant 0 : i32
    return %c0_i32, %c0_i32_0 : i32, i32
  }
  func.func @transform_6(%arg0: i32) -> (i32, i32) {
    %c0_i32 = arith.constant 0 : i32
    %c0_i32_0 = arith.constant 0 : i32
    %c0_i32_1 = arith.constant 0 : i32
    return %c0_i32, %c0_i32_0 : i32, i32
  }
  func.func @transform_7(%arg0: i32) -> (i32, i32) {
    %c0_i32 = arith.constant 0 : i32
    %c0_i32_0 = arith.constant 0 : i32
    return %arg0, %c0_i32 : i32, i32
  }
}

</mosaic_0001>

<llo_original>
// kernel: tpu_custom_call.1
$region0: #{tpu_custom_call.1}
  #allocation0 [shape = 'u32[]', space=smem, size = 0x4, offset = 0x4, fixed_abs, tag = 'smem constant byte address 0x4 - core index']
  #allocation1 [shape = 'u32[144,128]{1,0:T(1,128)}', space=vmem, size = 0x12000, scoped, tag = 'internal scratch']
  #allocation2 [shape = 'f32[1,1]{1,0:T(1,128)S(1)}', space=vmem, size = 0x200, scoped, tag = 'scoped memory for tpu_custom_call.1']
  %s0 = inlined_call_operand.vmem [shape: f32[8,32], index: 0, kind: input, shape index: {}]
  %s1 = inlined_call_operand.vmem [shape: f32[32,64], index: 1, kind: input, shape index: {}]
  %s2 = inlined_call_operand.vmem [shape: f32[1,64], index: 2, kind: input, shape index: {}]
  %s3 = inlined_call_operand.vmem [shape: f32[64,32], index: 3, kind: input, shape index: {}]
  %s4 = inlined_call_operand.vmem [shape: f32[1,32], index: 4, kind: input, shape index: {}]
  %s5 = inlined_call_operand.vmem [shape: f32[1,32], index: 5, kind: input, shape index: {}]
  %s6 = inlined_call_operand.<no memory space> [shape: f32[1,1], index: 6, kind: input, shape index: {}]
  %s7 = inlined_call_operand.vmem [shape: f32[8,1], index: 7, kind: output, shape index: {}]
  %s8 = sld [smem:[#allocation0]]
  $region38: #{tpu_custom_call.1} parent=0
    _
  %s10 = ssub.s32 1, %s8
  %s11 = scalar_select 0, %s10, %s8
  %v12 = vstv %s6
  %13 = vst [vmem:[#allocation2] sm:$0x1] %v12
  // Predicated region
  $region2: #{tpu_custom_call.1} parent=0 // pred_check
    _
  $region3: #{tpu_custom_call.1} parent=0 // pred_check_branch
    %15 = sbr.rel (0) target = $region5
  $region4: #{tpu_custom_call.1} parent=0 // pred_region
    _
  $region5: #{tpu_custom_call.1} parent=0 // pred_fallthru
    _
  // Predicated region
  $region6: #{tpu_custom_call.1} parent=0 // pred_check
    _
  $region7: #{tpu_custom_call.1} parent=0 // pred_check_branch
    %17 = sbr.rel (0) target = $region9
  $region8: #{tpu_custom_call.1} parent=0 // pred_region
    _
  $region9: #{tpu_custom_call.1} parent=0 // pred_fallthru
    _
  // Predicated region
  $region10: #{tpu_custom_call.1} parent=0 // pred_check
    _
  $region11: #{tpu_custom_call.1} parent=0 // pred_check_branch
    %19 = sbr.rel (0) target = $region13
  $region12: #{tpu_custom_call.1} parent=0 // pred_region
    _
  $region13: #{tpu_custom_call.1} parent=0 // pred_fallthru
    _
  // Predicated region
  $region14: #{tpu_custom_call.1} parent=0 // pred_check
    _
  $region15: #{tpu_custom_call.1} parent=0 // pred_check_branch
    %21 = sbr.rel (0) target = $region17
  $region16: #{tpu_custom_call.1} parent=0 // pred_region
    _
  $region17: #{tpu_custom_call.1} parent=0 // pred_fallthru
    _
  // Predicated region
  $region18: #{tpu_custom_call.1} parent=0 // pred_check
    _
  $region19: #{tpu_custom_call.1} parent=0 // pred_check_branch
    %23 = sbr.rel (0) target = $region21
  $region20: #{tpu_custom_call.1} parent=0 // pred_region
    _
  $region21: #{tpu_custom_call.1} parent=0 // pred_fallthru
    _
  // Predicated region
  $region22: #{tpu_custom_call.1} parent=0 // pred_check
    _
  $region23: #{tpu_custom_call.1} parent=0 // pred_check_branch
    %25 = sbr.rel (0) target = $region25
  $region24: #{tpu_custom_call.1} parent=0 // pred_region
    _
  $region25: #{tpu_custom_call.1} parent=0 // pred_fallthru
    _
  // Predicated region
  $region26: #{tpu_custom_call.1} parent=0 // pred_check
    _
  $region27: #{tpu_custom_call.1} parent=0 // pred_check_branch
    %27 = sbr.rel (0) target = $region29
  $region28: #{tpu_custom_call.1} parent=0 // pred_region
    _
  $region29: #{tpu_custom_call.1} parent=0 // pred_fallthru
    _
  %v28 = vld [vmem:[%s0] sm:$0xff]
  %v29 = vld [vmem:[%s1] sm:$0xff]
  %v30 = vld [vmem:[%s1 + $0x8] sm:$0xff]
  %v31 = vld [vmem:[%s1 + $0x10] sm:$0xff]
  %v32 = vld [vmem:[%s1 + $0x18] sm:$0xff]
  %v33 = vld [vmem:[%s2] sm:$0x1]
  %v35 = vlaneseq
  %v36 = vshrl.u32 %v35, 7
  %v37 = vsub.s32 0, %v36
  %v38 = vrot.slane %v33, %v37
  %vm40 = vcmask 261120
  %v42 = vsel %vm40, %v28, 0
  %44 = vmatprep.subr.mxu0 0.0
  %45 = vmatpush1.msra.mxu0 %v29
  %46 = vmatprep.subr.mxu0 0.0
  %47 = vmatpush1.msra.mxu0 %v30
  %48 = vmatprep.subr.mxu0 0.0
  %49 = vmatpush1.msra.mxu0 %v31
  %50 = vmatprep.subr.mxu0 0.0
  %51 = vmatpush1.msra.mxu0 %v32
  %52 = vmatprep.subr.mxu0 0.0
  %53 = vmatpush1.msra.mxu0 0.0
  %54 = vmatprep.subr.mxu0 0.0
  %55 = vmatpush1.msra.mxu0 0.0
  %56 = vmatprep.subr.mxu0 0.0
  %57 = vmatpush1.msra.mxu0 0.0
  %58 = vmatprep.subr.mxu0 0.0
  %59 = vmatpush1.msra.mxu0 0.0
  %60 = vmatprep.subr.mxu0 0.0
  %61 = vmatpush1.msra.mxu0 0.0
  %62 = vmatprep.subr.mxu0 0.0
  %63 = vmatpush1.msra.mxu0 0.0
  %64 = vmatprep.subr.mxu0 0.0
  %65 = vmatpush1.msra.mxu0 0.0
  %66 = vmatprep.subr.mxu0 0.0
  %67 = vmatpush1.msra.mxu0 0.0
  %68 = vmatprep.subr.mxu0 0.0
  %69 = vmatpush1.msra.mxu0 0.0
  %70 = vmatprep.subr.mxu0 0.0
  %71 = vmatpush1.msra.mxu0 0.0
  %72 = vmatprep.subr.mxu0 0.0
  %73 = vmatpush1.msra.mxu0 0.0
  %74 = vmatprep.subr.mxu0 0.0
  %75 = vmatpush1.msra.mxu0 0.0
  %76 = vmatprep.subr.mxu0 0.0
  %77 = vmatpush1.msra.mxu0 0.0
  %78 = vmatprep.subr.mxu0 0.0
  %79 = vmatpush1.msra.mxu0 0.0
  %80 = vmatprep.subr.mxu0 0.0
  %81 = vmatpush1.msra.mxu0 0.0
  %82 = vmatprep.subr.mxu0 0.0
  %83 = vmatpush1.msra.mxu0 0.0
  %84 = vmatprep.subr.mxu0 0.0
  %85 = vmatpush1.msra.mxu0 0.0
  %86 = vmatprep.subr.mxu0 0.0
  %87 = vmatpush1.msra.mxu0 0.0
  %88 = vmatprep.subr.mxu0 0.0
  %89 = vmatpush1.msra.mxu0 0.0
  %90 = vmatprep.subr.mxu0 0.0
  %91 = vmatpush1.msra.mxu0 0.0
  %92 = vmatprep.subr.mxu0 0.0
  %93 = vmatpush1.msra.mxu0 0.0
  %94 = vmatprep.subr.mxu0 0.0
  %95 = vmatpush1.msra.mxu0 0.0
  %96 = vmatprep.subr.mxu0 0.0
  %97 = vmatpush1.msra.mxu0 0.0
  %98 = vmatprep.subr.mxu0 0.0
  %99 = vmatpush1.msra.mxu0 0.0
  %100 = vmatprep.subr.mxu0 0.0
  %101 = vmatpush1.msra.mxu0 0.0
  %102 = vmatprep.subr.mxu0 0.0
  %103 = vmatpush1.msra.mxu0 0.0
  %104 = vmatprep.subr.mxu0 0.0
  %105 = vmatpush1.msra.mxu0 0.0
  %106 = vmatprep.subr.mxu0 0.0
  %107 = vmatpush1.msra.mxu0 0.0
  %108 = vmatprep.mubr.f32.mxu0 0.0
  %109 = vmatmul.mubr.f32.gmra.mrb[0].mxu0 %v42
  %v110 = vpop.f32.mrb[0].mxu0
  %v111 = vadd.f32 %v38, %v110
  %v112 = vpop.f32.mrb[0].mxu0
  %113 = vdwg.mxu0
  %v114 = vmax.f32 %v111, 0.0
  %v115 = vld [vmem:[%s3] sm:$0xff]
  %v116 = vld [vmem:[%s3 + $0x8] sm:$0xff]
  %v117 = vld [vmem:[%s3 + $0x10] sm:$0xff]
  %v118 = vld [vmem:[%s3 + $0x18] sm:$0xff]
  %v119 = vld [vmem:[%s3 + $0x20] sm:$0xff]
  %v120 = vld [vmem:[%s3 + $0x28] sm:$0xff]
  %v121 = vld [vmem:[%s3 + $0x30] sm:$0xff]
  %v122 = vld [vmem:[%s3 + $0x38] sm:$0xff]
  %v123 = vld [vmem:[%s4] sm:$0x1]
  %v125 = vlaneseq
  %v126 = vshrl.u32 %v125, 7
  %v127 = vsub.s32 0, %v126
  %v128 = vrot.slane %v123, %v127
  %vm130 = vcmask 523264
  %v132 = vsel %vm130, %v114, 0
  %134 = vmatprep.subr.mxu0 0.0
  %135 = vmatpush1.msra.mxu0 %v115
  %136 = vmatprep.subr.mxu0 0.0
  %137 = vmatpush1.msra.mxu0 %v116
  %138 = vmatprep.subr.mxu0 0.0
  %139 = vmatpush1.msra.mxu0 %v117
  %140 = vmatprep.subr.mxu0 0.0
  %141 = vmatpush1.msra.mxu0 %v118
  %142 = vmatprep.subr.mxu0 0.0
  %143 = vmatpush1.msra.mxu0 %v119
  %144 = vmatprep.subr.mxu0 0.0
  %145 = vmatpush1.msra.mxu0 %v120
  %146 = vmatprep.subr.mxu0 0.0
  %147 = vmatpush1.msra.mxu0 %v121
  %148 = vmatprep.subr.mxu0 0.0
  %149 = vmatpush1.msra.mxu0 %v122
  %150 = vmatprep.subr.mxu0 0.0
  %151 = vmatpush1.msra.mxu0 0.0
  %152 = vmatprep.subr.mxu0 0.0
  %153 = vmatpush1.msra.mxu0 0.0
  %154 = vmatprep.subr.mxu0 0.0
  %155 = vmatpush1.msra.mxu0 0.0
  %156 = vmatprep.subr.mxu0 0.0
  %157 = vmatpush1.msra.mxu0 0.0
  %158 = vmatprep.subr.mxu0 0.0
  %159 = vmatpush1.msra.mxu0 0.0
  %160 = vmatprep.subr.mxu0 0.0
  %161 = vmatpush1.msra.mxu0 0.0
  %162 = vmatprep.subr.mxu0 0.0
  %163 = vmatpush1.msra.mxu0 0.0
  %164 = vmatprep.subr.mxu0 0.0
  %165 = vmatpush1.msra.mxu0 0.0
  %166 = vmatprep.subr.mxu0 0.0
  %167 = vmatpush1.msra.mxu0 0.0
  %168 = vmatprep.subr.mxu0 0.0
  %169 = vmatpush1.msra.mxu0 0.0
  %170 = vmatprep.subr.mxu0 0.0
  %171 = vmatpush1.msra.mxu0 0.0
  %172 = vmatprep.subr.mxu0 0.0
  %173 = vmatpush1.msra.mxu0 0.0
  %174 = vmatprep.subr.mxu0 0.0
  %175 = vmatpush1.msra.mxu0 0.0
  %176 = vmatprep.subr.mxu0 0.0
  %177 = vmatpush1.msra.mxu0 0.0
  %178 = vmatprep.subr.mxu0 0.0
  %179 = vmatpush1.msra.mxu0 0.0
  %180 = vmatprep.subr.mxu0 0.0
  %181 = vmatpush1.msra.mxu0 0.0
  %182 = vmatprep.subr.mxu0 0.0
  %183 = vmatpush1.msra.mxu0 0.0
  %184 = vmatprep.subr.mxu0 0.0
  %185 = vmatpush1.msra.mxu0 0.0
  %186 = vmatprep.subr.mxu0 0.0
  %187 = vmatpush1.msra.mxu0 0.0
  %188 = vmatprep.subr.mxu0 0.0
  %189 = vmatpush1.msra.mxu0 0.0
  %190 = vmatprep.subr.mxu0 0.0
  %191 = vmatpush1.msra.mxu0 0.0
  %192 = vmatprep.subr.mxu0 0.0
  %193 = vmatpush1.msra.mxu0 0.0
  %194 = vmatprep.subr.mxu0 0.0
  %195 = vmatpush1.msra.mxu0 0.0
  %196 = vmatprep.subr.mxu0 0.0
  %197 = vmatpush1.msra.mxu0 0.0
  %198 = vmatprep.mubr.f32.mxu0 0.0
  %199 = vmatmul.mubr.f32.gmra.mrb[0].mxu0 %v132
  %v200 = vpop.f32.mrb[0].mxu0
  %v201 = vadd.f32 %v128, %v200
  %v202 = vpop.f32.mrb[0].mxu0
  %203 = vdwg.mxu0
  %v204 = vmax.f32 %v201, 0.0
  %v205 = vld [vmem:[%s5] sm:$0x1]
  %v207 = vlaneseq
  %v208 = vshrl.u32 %v207, 7
  %v209 = vsub.s32 0, %v208
  %v210 = vrot.slane %v205, %v209
  %v212 = vmul.f32 %v204, %v210
  %v213 = vsel %vm40, %v212, 0.0
  %214 = vadd.xlane.f32.xlu0 %v213
  %v215 = vpop.xlane.xlu0 %214
  %v216 = vld [vmem:[#allocation2] sm:$0x1]
  %v218 = vlaneseq
  %v219 = vshrl.u32 %v218, 7
  %v220 = vsub.s32 0, %v219
  %v221 = vrot.slane %v216, %v220
  %v223 = vadd.f32 %v215, %v221
  %vm224 = vcmask 7168
  %225 = vst.msk [vmem:[%s7] sm:$0xff] %vm224, %v223
  // Predicated region
  $region30: #{tpu_custom_call.1} parent=0 // pred_check
    _
  $region31: #{tpu_custom_call.1} parent=0 // pred_check_branch
    %227 = sbr.rel (0) target = $region33
  $region32: #{tpu_custom_call.1} parent=0 // pred_region
    _
  $region33: #{tpu_custom_call.1} parent=0 // pred_fallthru
    _
  // Predicated region
  $region34: #{tpu_custom_call.1} parent=0 // pred_check
    _
  $region35: #{tpu_custom_call.1} parent=0 // pred_check_branch
    %229 = sbr.rel (0) target = $region37
  $region36: #{tpu_custom_call.1} parent=0 // pred_region
    _
  $region37: #{tpu_custom_call.1} parent=0 // pred_fallthru
    _

</llo_original>
